<compile_context>
chip_gen: v6e
topology: v6e:2x2x1
jax: 0.10.0
libtpu: 0.0.40
codegen_flags: <defaults>
</compile_context>

<pallas_src>
import math
from functools import partial

import jax
import jax.numpy as jnp
from jax.experimental import pallas as pl
from jax.experimental.pallas import tpu as pltpu

C = 512          # channel / hidden dim fixed by nn.Linear(512, 512)
TB_MASK = 8      # batch rows per mask-kernel grid step (min sublane tile)
TP_MAX = 256     # spatial positions per mask-kernel grid step when tiling P


def _round_up(a, m):
    return (a + m - 1) // m * m


# ---------------------------------------------------------------------------
# Kernel 1: batched "group" MLP over a (TB, C) batch tile.
#   g_scaled = sigmoid(tanh(x @ W1^T) @ W2^T) * (1/C)   (1/C = channel mean)
# ---------------------------------------------------------------------------
def group_mlp_kernel(x_ref, w1t_ref, w2t_ref, g_ref):
    h = jnp.tanh(jnp.dot(x_ref[...], w1t_ref[...],
                         preferred_element_type=jnp.float32))
    g = jax.nn.sigmoid(jnp.dot(h, w2t_ref[...],
                               preferred_element_type=jnp.float32))
    g_ref[...] = (g * (1.0 / C)).astype(g_ref.dtype)


# ---------------------------------------------------------------------------
# Kernel 2: channel-mean mask + sigmoid + exact softmax over spatial positions.
#   y tile (TB, TP, C) is lane-dense on C; output block (TB, P_pad) is resident
#   across the "arbitrary" spatial axis; running exp-sum scratch makes the
#   softmax exact under spatial tiling (no max needed: sigmoid(s) in (0,1)).
# ---------------------------------------------------------------------------
def mask_kernel(g_ref, y_ref, o_ref, sum_ref, *, p_true, p_pad, tp):
    j = pl.program_id(1)

    @pl.when(j == 0)
    def _init():
        sum_ref[...] = jnp.zeros_like(sum_ref)

    g = g_ref[...]                                   # (TB, C), already * 1/C
    yb = y_ref[...]                                  # (TB, TP, C)
    # channel mean: VPU multiply + lane reduction over C (C on lanes)
    s = jnp.sum(g[:, None, :] * yb, axis=-1)         # (TB, TP)
    e = jnp.exp(jax.nn.sigmoid(s))

    if p_pad > p_true:   # static: mask padded spatial columns out of the sum
        col = j * tp + jax.lax.broadcasted_iota(jnp.int32, e.shape, 1)
        e = jnp.where(col < p_true, e, 0.0)

    if p_pad == tp:      # static: single spatial tile -> full-block store
        o_ref[...] = e
    else:                # aligned dynamic lane-slice store (tp % 128 == 0)
        o_ref[:, pl.ds(pl.multiple_of(j * tp, tp), tp)] = e

    sum_ref[...] += jnp.sum(e, axis=-1, keepdims=True)

    @pl.when(j == pl.num_programs(1) - 1)
    def _finalize():
        inv = pl.reciprocal(sum_ref[...], approx=False)
        o_ref[...] = o_ref[...] * inv


def channel_group_sub(x, y, w1, w2):
    """x: (B, C) f32, y: (B, C, H, W) f32, w1/w2: (C, C) PyTorch (out, in)."""
    B, Cc, H, W = y.shape
    assert Cc == C and x.shape == (B, C)
    P = H * W

    # ---- padding & tile sizes ----------------------------------------------
    tb_mlp = min(256, _round_up(B, 8))
    b_pad = _round_up(B, tb_mlp)                 # multiple of 8 and of TB_MASK
    if P <= TP_MAX:
        tp, p_pad = P, P                         # single spatial tile
    else:
        tp = TP_MAX                              # multiple of 128 (lane aligned)
        p_pad = _round_up(P, tp)

    x_pad = jnp.pad(x, ((0, b_pad - B), (0, 0)))
    w1t = w1.T                                   # (in, out): kernel does x @ w1t
    w2t = w2.T

    # ---- kernel 1: batched group MLP pre-pass (1/C folded into g) ----------
    g_scaled = pl.pallas_call(
        group_mlp_kernel,
        out_shape=jax.ShapeDtypeStruct((b_pad, C), jnp.float32),
        grid=(b_pad // tb_mlp,),
        in_specs=[
            pl.BlockSpec((tb_mlp, C), lambda i: (i, 0)),
            pl.BlockSpec((C, C), lambda i: (0, 0)),
            pl.BlockSpec((C, C), lambda i: (0, 0)),
        ],
        out_specs=pl.BlockSpec((tb_mlp, C), lambda i: (i, 0)),
        compiler_params=pltpu.CompilerParams(dimension_semantics=("parallel",)),
        cost_estimate=pl.CostEstimate(
            flops=4 * b_pad * C * C,
            transcendentals=2 * b_pad * C,
            bytes_accessed=4 * (2 * b_pad * C + 2 * C * C),
        ),
    )(x_pad, w1t, w2t)

    # ---- y: (B, C, H, W) -> lane-dense (B_pad, P_pad, C) --------------------
    y_t = jnp.transpose(y.reshape(B, C, P), (0, 2, 1))
    y_t = jnp.pad(y_t, ((0, b_pad - B), (0, p_pad - P), (0, 0)))

    # ---- kernel 2: channel mean + sigmoid + exact softmax over P -----------
    kern = partial(mask_kernel, p_true=P, p_pad=p_pad, tp=tp)
    out = pl.pallas_call(
        kern,
        out_shape=jax.ShapeDtypeStruct((b_pad, p_pad), jnp.float32),
        grid=(b_pad // TB_MASK, p_pad // tp),
        in_specs=[
            pl.BlockSpec((TB_MASK, C), lambda i, j: (i, 0)),
            pl.BlockSpec((TB_MASK, tp, C), lambda i, j: (i, j, 0)),
        ],
        out_specs=pl.BlockSpec((TB_MASK, p_pad), lambda i, j: (i, 0)),
        scratch_shapes=[pltpu.VMEM((TB_MASK, 1), jnp.float32)],
        compiler_params=pltpu.CompilerParams(
            dimension_semantics=("parallel", "arbitrary")),
        cost_estimate=pl.CostEstimate(
            flops=2 * b_pad * p_pad * C,
            transcendentals=2 * b_pad * p_pad,
            bytes_accessed=4 * (b_pad * p_pad * C + b_pad * C + b_pad * p_pad),
        ),
    )(g_scaled, y_t)

    return out[:B, :P]


def _reference(x, y, w1, w2):
    """Pure-JAX mirror of the PyTorch forward pass."""
    B, Cc, _, _ = y.shape
    g = jax.nn.sigmoid(jnp.tanh(x @ w1.T) @ w2.T)            # (B, C)
    m = (g[:, :, None, None] * y).reshape(B, Cc, -1)         # (B, C, P)
    m = jnp.transpose(m, (0, 2, 1)).mean(axis=-1)            # (B, P)
    m = jax.nn.sigmoid(m)
    return jax.nn.softmax(m, axis=1)


if __name__ == "__main__":
    key = jax.random.PRNGKey(0)
    k_x, k_y, k_w1, k_w2 = jax.random.split(key, 4)

    B, H, W = 2, 4, 4
    x = jax.random.normal(k_x, (B, C), dtype=jnp.float32)
    y = jax.random.normal(k_y, (B, C, H, W), dtype=jnp.float32)

    # xavier_normal_ for Linear(512, 512): std = sqrt(2 / (fan_in + fan_out))
    std = math.sqrt(2.0 / (C + C))
    w1 = std * jax.random.normal(k_w1, (C, C), dtype=jnp.float32)
    w2 = std * jax.random.normal(k_w2, (C, C), dtype=jnp.float32)

    out = channel_group_sub(x, y, w1, w2)
    out = jax.block_until_ready(out)

    ref = _reference(x, y, w1, w2)
    assert out.shape == (B, H * W)
    err = float(jnp.max(jnp.abs(out - ref)))
    assert bool(jnp.allclose(out, ref, atol=1e-5, rtol=1e-5)), err
    print("KERNEL_OK")
</pallas_src>

<mosaic_0001>
module attributes {stable_mosaic.version = 11 : i64} {
  func.func @group_mlp_kernel(%arg0: i32, %arg1: memref<8x512xf32, #tpu.memory_space<vmem>>, %arg2: memref<512x512xf32, #tpu.memory_space<vmem>>, %arg3: memref<512x512xf32, #tpu.memory_space<vmem>>, %arg4: memref<8x512xf32, #tpu.memory_space<vmem>>) attributes {dimension_semantics = [#tpu.dimension_semantics<parallel>], iteration_bounds = array<i64: 1>, scalar_prefetch = 0 : i64, scratch_operands = 0 : i64, tpu.core_type = #tpu.core_type<tc>, window_params = [{transform_indices = @transform_0, window_bounds = array<i64: 8, 512>}, {pipeline_mode = #tpu.pipeline_mode<synchronous>, transform_indices = @transform_1, window_bounds = array<i64: 512, 512>}, {pipeline_mode = #tpu.pipeline_mode<synchronous>, transform_indices = @transform_2, window_bounds = array<i64: 512, 512>}, {transform_indices = @transform_3, window_bounds = array<i64: 8, 512>}]} {
    %c0 = arith.constant 0 : index
    %c0_0 = arith.constant 0 : index
    %0 = vector.load %arg1[%c0, %c0_0] : memref<8x512xf32, #tpu.memory_space<vmem>>, vector<8x512xf32>
    %c0_1 = arith.constant 0 : index
    %c0_2 = arith.constant 0 : index
    %1 = vector.load %arg2[%c0_1, %c0_2] : memref<512x512xf32, #tpu.memory_space<vmem>>, vector<512x512xf32>
    %cst = arith.constant dense<0.000000e+00> : vector<8x512xf32>
    %2 = tpu.matmul %0, %1, %cst {dimension_numbers = #tpu.dot_dimension_numbers<[1], [0], [0], [1], [0, 0, 1, 1], [], []>} : vector<8x512xf32>, vector<512x512xf32>, vector<8x512xf32> -> vector<8x512xf32>
    %3 = math.tanh %2 : vector<8x512xf32>
    %c0_3 = arith.constant 0 : index
    %c0_4 = arith.constant 0 : index
    %4 = vector.load %arg3[%c0_3, %c0_4] : memref<512x512xf32, #tpu.memory_space<vmem>>, vector<512x512xf32>
    %cst_5 = arith.constant dense<0.000000e+00> : vector<8x512xf32>
    %5 = tpu.matmul %3, %4, %cst_5 {dimension_numbers = #tpu.dot_dimension_numbers<[1], [0], [0], [1], [0, 0, 1, 1], [], []>} : vector<8x512xf32>, vector<512x512xf32>, vector<8x512xf32> -> vector<8x512xf32>
    %6 = arith.negf %5 : vector<8x512xf32>
    %7 = math.exp %6 : vector<8x512xf32>
    %cst_6 = arith.constant 1.000000e+00 : f32
    %8 = vector.broadcast %cst_6 : f32 to vector<8x512xf32>
    %9 = arith.addf %8, %7 : vector<8x512xf32>
    %10 = arith.divf %8, %9 : vector<8x512xf32>
    %cst_7 = arith.constant 0.001953125 : f32
    %11 = vector.broadcast %cst_7 : f32 to vector<8x512xf32>
    %12 = arith.mulf %10, %11 : vector<8x512xf32>
    %c0_8 = arith.constant 0 : index
    %c0_9 = arith.constant 0 : index
    %13 = vector.load %arg4[%c0_8, %c0_9] : memref<8x512xf32, #tpu.memory_space<vmem>>, vector<8x512xf32>
    tpu.vector_store %arg4[%c0_8, %c0_9], %12 {strides = array<i32>} : memref<8x512xf32, #tpu.memory_space<vmem>>, vector<8x512xf32>,
    return
  }
  func.func @transform_0(%arg0: i32) -> (i32, i32) {
    %c0_i32 = arith.constant 0 : i32
    %c0_i32_0 = arith.constant 0 : i32
    return %arg0, %c0_i32 : i32, i32
  }
  func.func @transform_1(%arg0: i32) -> (i32, i32) {
    %c0_i32 = arith.constant 0 : i32
    %c0_i32_0 = arith.constant 0 : i32
    %c0_i32_1 = arith.constant 0 : i32
    return %c0_i32, %c0_i32_0 : i32, i32
  }
  func.func @transform_2(%arg0: i32) -> (i32, i32) {
    %c0_i32 = arith.constant 0 : i32
    %c0_i32_0 = arith.constant 0 : i32
    %c0_i32_1 = arith.constant 0 : i32
    return %c0_i32, %c0_i32_0 : i32, i32
  }
  func.func @transform_3(%arg0: i32) -> (i32, i32) {
    %c0_i32 = arith.constant 0 : i32
    %c0_i32_0 = arith.constant 0 : i32
    return %arg0, %c0_i32 : i32, i32
  }
}

</mosaic_0001>

<llo_original>
// kernel: tpu_custom_call.1
$region0: #{tpu_custom_call.1}
  #allocation0 [shape = 'u32[]', space=smem, size = 0x4, offset = 0x4, fixed_abs, tag = 'smem constant byte address 0x4 - core index']
  #allocation1 [shape = 'u32[144,128]{1,0:T(1,128)}', space=vmem, size = 0x12000, scoped, tag = 'internal scratch']
  %s0 = inlined_call_operand.hbm [shape: f32[8,512], index: 0, kind: input, shape index: {}]
  %s1 = inlined_call_operand.hbm [shape: f32[512,512], index: 1, kind: input, shape index: {}]
  %s2 = inlined_call_operand.hbm [shape: f32[512,512], index: 2, kind: input, shape index: {}]
  %s3 = inlined_call_operand.hbm [shape: f32[8,512], index: 3, kind: output, shape index: {}]
  %s4 = sld [smem:[#allocation0]]
  $region34: #{tpu_custom_call.1} parent=0
    _
  %s6 = ssub.s32 1, %s4
  %s7 = scalar_select 0, %s6, %s4
  $region1: #{tpu_custom_call.1} parent=0
    #allocation2 [shape = 'u8[16384]{0}', space=vmem, size = 0x4000, scoped, tag = 'input window, operand 0, single buffered']
    #allocation3 [shape = 's32[1]{0}', space=sflag, size = 0x4, scoped, tag = 'scoped memory for tpu_custom_call.1']
    #allocation4 [shape = 's32[1]{0}', space=sflag, size = 0x4, scoped, tag = 'scoped memory for tpu_custom_call.1']
    #allocation5 [shape = 'u8[1048576]{0}', space=vmem, size = 0x100000, scoped, tag = 'input window, operand 1, single buffered']
    #allocation6 [shape = 's32[1]{0}', space=sflag, size = 0x4, scoped, tag = 'scoped memory for tpu_custom_call.1']
    #allocation7 [shape = 'u8[1048576]{0}', space=vmem, size = 0x100000, scoped, tag = 'input window, operand 2, single buffered']
    #allocation8 [shape = 'u8[16384]{0}', space=vmem, size = 0x4000, scoped, tag = 'output window, operand 0, single buffered']
    %8 = vsyncpa [#allocation3], 0
    %9 = vsyncpa [#allocation6], 0
    %10 = vsyncpa [#allocation4], 0
    // Predicated region
    $region2: #{tpu_custom_call.1} parent=1 // pred_check
      _
    $region3: #{tpu_custom_call.1} parent=1 // pred_check_branch
      %12 = sbr.rel (0) target = $region5
    $region4: #{tpu_custom_call.1} parent=1 // pred_region
      %s14 = ssub.s32 512, 512
      %15 = vsyncadd [#allocation3], %s14
      %s17 = sshll.u32 [#allocation2], 4
      %s18 = int_to_ptr.vmem [resolvable:$true] %s17
      %20 = dma.hbm_to_vmem [thread:$0]  %s0, 512, %s18, [#allocation3]
    $region5: #{tpu_custom_call.1} parent=1 // pred_fallthru
      _
    // Predicated region
    $region6: #{tpu_custom_call.1} parent=1 // pred_check
      _
    $region7: #{tpu_custom_call.1} parent=1 // pred_check_branch
      %22 = sbr.rel (0) target = $region9
    $region8: #{tpu_custom_call.1} parent=1 // pred_region
      %s24 = ssub.s32 32768, 32768
      %25 = vsyncadd [#allocation6], %s24
      %s26 = sshll.u32 [#allocation5], 4
      %s27 = int_to_ptr.vmem [resolvable:$true] %s26
      %32 = dma.hbm_to_vmem [thread:$0]  %s1, 32768, %s27, [#allocation6], 512, 512, 32
    $region9: #{tpu_custom_call.1} parent=1 // pred_fallthru
      _
    // Predicated region
    $region10: #{tpu_custom_call.1} parent=1 // pred_check
      _
    $region11: #{tpu_custom_call.1} parent=1 // pred_check_branch
      %34 = sbr.rel (0) target = $region13
    $region12: #{tpu_custom_call.1} parent=1 // pred_region
      %s36 = ssub.s32 32768, 32768
      %37 = vsyncadd [#allocation6], %s36
      %s38 = sshll.u32 [#allocation7], 4
      %s39 = int_to_ptr.vmem [resolvable:$true] %s38
      %44 = dma.hbm_to_vmem [thread:$0]  %s2, 32768, %s39, [#allocation6], 512, 512, 32
    $region13: #{tpu_custom_call.1} parent=1 // pred_fallthru
      _
    // Predicated region
    $region14: #{tpu_custom_call.1} parent=1 // pred_check
      _
    $region15: #{tpu_custom_call.1} parent=1 // pred_check_branch
      %46 = sbr.rel (0) target = $region17
    $region16: #{tpu_custom_call.1} parent=1 // pred_region
      %47 = dma.done [#allocation3], 512
    $region17: #{tpu_custom_call.1} parent=1 // pred_fallthru
      _
    // Predicated region
    $region18: #{tpu_custom_call.1} parent=1 // pred_check
      _
    $region19: #{tpu_custom_call.1} parent=1 // pred_check_branch
      %49 = sbr.rel (0) target = $region21
    $region20: #{tpu_custom_call.1} parent=1 // pred_region
      %50 = dma.done [#allocation6], 32768
    $region21: #{tpu_custom_call.1} parent=1 // pred_fallthru
      _
    // Predicated region
    $region22: #{tpu_custom_call.1} parent=1 // pred_check
      _
    $region23: #{tpu_custom_call.1} parent=1 // pred_check_branch
      %52 = sbr.rel (0) target = $region25
    $region24: #{tpu_custom_call.1} parent=1 // pred_region
      %53 = dma.done [#allocation6], 32768
    $region25: #{tpu_custom_call.1} parent=1 // pred_fallthru
      _
    %v54 = vld [vmem:[#allocation2] sm:$0xff]
    %v55 = vld [vmem:[#allocation2 + $0x8] sm:$0xff]
    %v56 = vld [vmem:[#allocation2 + $0x10] sm:$0xff]
    %v57 = vld [vmem:[#allocation2 + $0x18] sm:$0xff]
    %v58 = vld [vmem:[#allocation5] sm:$0xff]
    %v59 = vld [vmem:[#allocation5 + $0x8] sm:$0xff]
    %v60 = vld [vmem:[#allocation5 + $0x10] sm:$0xff]
    %v61 = vld [vmem:[#allocation5 + $0x18] sm:$0xff]
    %v62 = vld [vmem:[#allocation5 + $0x20] sm:$0xff]
    %v63 = vld [vmem:[#allocation5 + $0x28] sm:$0xff]
    %v64 = vld [vmem:[#allocation5 + $0x30] sm:$0xff]
    %v65 = vld [vmem:[#allocation5 + $0x38] sm:$0xff]
    %v66 = vld [vmem:[#allocation5 + $0x40] sm:$0xff]
    %v67 = vld [vmem:[#allocation5 + $0x48] sm:$0xff]
    %v68 = vld [vmem:[#allocation5 + $0x50] sm:$0xff]
    %v69 = vld [vmem:[#allocation5 + $0x58] sm:$0xff]
    %v70 = vld [vmem:[#allocation5 + $0x60] sm:$0xff]
    %v71 = vld [vmem:[#allocation5 + $0x68] sm:$0xff]
    %v72 = vld [vmem:[#allocation5 + $0x70] sm:$0xff]
    %v73 = vld [vmem:[#allocation5 + $0x78] sm:$0xff]
    %v74 = vld [vmem:[#allocation5 + $0x80] sm:$0xff]
    %v75 = vld [vmem:[#allocation5 + $0x88] sm:$0xff]
    %v76 = vld [vmem:[#allocation5 + $0x90] sm:$0xff]
    %v77 = vld [vmem:[#allocation5 + $0x98] sm:$0xff]
    %v78 = vld [vmem:[#allocation5 + $0xa0] sm:$0xff]
    %v79 = vld [vmem:[#allocation5 + $0xa8] sm:$0xff]
    %v80 = vld [vmem:[#allocation5 + $0xb0] sm:$0xff]
    %v81 = vld [vmem:[#allocation5 + $0xb8] sm:$0xff]
    %v82 = vld [vmem:[#allocation5 + $0xc0] sm:$0xff]
    %v83 = vld [vmem:[#allocation5 + $0xc8] sm:$0xff]
    %v84 = vld [vmem:[#allocation5 + $0xd0] sm:$0xff]
    %v85 = vld [vmem:[#allocation5 + $0xd8] sm:$0xff]
    %v86 = vld [vmem:[#allocation5 + $0xe0] sm:$0xff]
    %v87 = vld [vmem:[#allocation5 + $0xe8] sm:$0xff]
    %v88 = vld [vmem:[#allocation5 + $0xf0] sm:$0xff]
    %v89 = vld [vmem:[#allocation5 + $0xf8] sm:$0xff]
    %v90 = vld [vmem:[#allocation5 + $0x100] sm:$0xff]
    %v91 = vld [vmem:[#allocation5 + $0x108] sm:$0xff]
    %v92 = vld [vmem:[#allocation5 + $0x110] sm:$0xff]
    %v93 = vld [vmem:[#allocation5 + $0x118] sm:$0xff]
    %v94 = vld [vmem:[#allocation5 + $0x120] sm:$0xff]
    %v95 = vld [vmem:[#allocation5 + $0x128] sm:$0xff]
    %v96 = vld [vmem:[#allocation5 + $0x130] sm:$0xff]
    %v97 = vld [vmem:[#allocation5 + $0x138] sm:$0xff]
    %v98 = vld [vmem:[#allocation5 + $0x140] sm:$0xff]
    %v99 = vld [vmem:[#allocation5 + $0x148] sm:$0xff]
    %v100 = vld [vmem:[#allocation5 + $0x150] sm:$0xff]
    %v101 = vld [vmem:[#allocation5 + $0x158] sm:$0xff]
    %v102 = vld [vmem:[#allocation5 + $0x160] sm:$0xff]
    %v103 = vld [vmem:[#allocation5 + $0x168] sm:$0xff]
    %v104 = vld [vmem:[#allocation5 + $0x170] sm:$0xff]
    %v105 = vld [vmem:[#allocation5 + $0x178] sm:$0xff]
    %v106 = vld [vmem:[#allocation5 + $0x180] sm:$0xff]
    %v107 = vld [vmem:[#allocation5 + $0x188] sm:$0xff]
    %v108 = vld [vmem:[#allocation5 + $0x190] sm:$0xff]
    %v109 = vld [vmem:[#allocation5 + $0x198] sm:$0xff]
    %v110 = vld [vmem:[#allocation5 + $0x1a0] sm:$0xff]
    %v111 = vld [vmem:[#allocation5 + $0x1a8] sm:$0xff]
    %v112 = vld [vmem:[#allocation5 + $0x1b0] sm:$0xff]
    %v113 = vld [vmem:[#allocation5 + $0x1b8] sm:$0xff]
    %v114 = vld [vmem:[#allocation5 + $0x1c0] sm:$0xff]
    %v115 = vld [vmem:[#allocation5 + $0x1c8] sm:$0xff]
    %v116 = vld [vmem:[#allocation5 + $0x1d0] sm:$0xff]
    %v117 = vld [vmem:[#allocation5 + $0x1d8] sm:$0xff]
    %v118 = vld [vmem:[#allocation5 + $0x1e0] sm:$0xff]
    %v119 = vld [vmem:[#allocation5 + $0x1e8] sm:$0xff]
    %v120 = vld [vmem:[#allocation5 + $0x1f0] sm:$0xff]
    %v121 = vld [vmem:[#allocation5 + $0x1f8] sm:$0xff]
    %v122 = vld [vmem:[#allocation5 + $0x200] sm:$0xff]
    %v123 = vld [vmem:[#allocation5 + $0x208] sm:$0xff]
    %v124 = vld [vmem:[#allocation5 + $0x210] sm:$0xff]
    %v125 = vld [vmem:[#allocation5 + $0x218] sm:$0xff]
    %v126 = vld [vmem:[#allocation5 + $0x220] sm:$0xff]
    %v127 = vld [vmem:[#allocation5 + $0x228] sm:$0xff]
    %v128 = vld [vmem:[#allocation5 + $0x230] sm:$0xff]
    %v129 = vld [vmem:[#allocation5 + $0x238] sm:$0xff]
    %v130 = vld [vmem:[#allocation5 + $0x240] sm:$0xff]
    %v131 = vld [vmem:[#allocation5 + $0x248] sm:$0xff]
    %v132 = vld [vmem:[#allocation5 + $0x250] sm:$0xff]
    %v133 = vld [vmem:[#allocation5 + $0x258] sm:$0xff]
    %v134 = vld [vmem:[#allocation5 + $0x260] sm:$0xff]
    %v135 = vld [vmem:[#allocation5 + $0x268] sm:$0xff]
    %v136 = vld [vmem:[#allocation5 + $0x270] sm:$0xff]
    %v137 = vld [vmem:[#allocation5 + $0x278] sm:$0xff]
    %v138 = vld [vmem:[#allocation5 + $0x280] sm:$0xff]
    %v139 = vld [vmem:[#allocation5 + $0x288] sm:$0xff]
    %v140 = vld [vmem:[#allocation5 + $0x290] sm:$0xff]
    %v141 = vld [vmem:[#allocation5 + $0x298] sm:$0xff]
    %v142 = vld [vmem:[#allocation5 + $0x2a0] sm:$0xff]
    %v143 = vld [vmem:[#allocation5 + $0x2a8] sm:$0xff]
    %v144 = vld [vmem:[#allocation5 + $0x2b0] sm:$0xff]
    %v145 = vld [vmem:[#allocation5 + $0x2b8] sm:$0xff]
    %v146 = vld [vmem:[#allocation5 + $0x2c0] sm:$0xff]
    %v147 = vld [vmem:[#allocation5 + $0x2c8] sm:$0xff]
    %v148 = vld [vmem:[#allocation5 + $0x2d0] sm:$0xff]
    %v149 = vld [vmem:[#allocation5 + $0x2d8] sm:$0xff]
    %v150 = vld [vmem:[#allocation5 + $0x2e0] sm:$0xff]
    %v151 = vld [vmem:[#allocation5 + $0x2e8] sm:$0xff]
    %v152 = vld [vmem:[#allocation5 + $0x2f0] sm:$0xff]
    %v153 = vld [vmem:[#allocation5 + $0x2f8] sm:$0xff]
    %v154 = vld [vmem:[#allocation5 + $0x300] sm:$0xff]
    %v155 = vld [vmem:[#allocation5 + $0x308] sm:$0xff]
    %v156 = vld [vmem:[#allocation5 + $0x310] sm:$0xff]
    %v157 = vld [vmem:[#allocation5 + $0x318] sm:$0xff]
    %v158 = vld [vmem:[#allocation5 + $0x320] sm:$0xff]
    %v159 = vld [vmem:[#allocation5 + $0x328] sm:$0xff]
    %v160 = vld [vmem:[#allocation5 + $0x330] sm:$0xff]
    %v161 = vld [vmem:[#allocation5 + $0x338] sm:$0xff]
    %v162 = vld [vmem:[#allocation5 + $0x340] sm:$0xff]
    %v163 = vld [vmem:[#allocation5 + $0x348] sm:$0xff]
    %v164 = vld [vmem:[#allocation5 + $0x350] sm:$0xff]
    %v165 = vld [vmem:[#allocation5 + $0x358] sm:$0xff]
    %v166 = vld [vmem:[#allocation5 + $0x360] sm:$0xff]
    %v167 = vld [vmem:[#allocation5 + $0x368] sm:$0xff]
    %v168 = vld [vmem:[#allocation5 + $0x370] sm:$0xff]
    %v169 = vld [vmem:[#allocation5 + $0x378] sm:$0xff]
    %v170 = vld [vmem:[#allocation5 + $0x380] sm:$0xff]
    %v171 = vld [vmem:[#allocation5 + $0x388] sm:$0xff]
    %v172 = vld [vmem:[#allocation5 + $0x390] sm:$0xff]
    %v173 = vld [vmem:[#allocation5 + $0x398] sm:$0xff]
    %v174 = vld [vmem:[#allocation5 + $0x3a0] sm:$0xff]
    %v175 = vld [vmem:[#allocation5 + $0x3a8] sm:$0xff]
    %v176 = vld [vmem:[#allocation5 + $0x3b0] sm:$0xff]
    %v177 = vld [vmem:[#allocation5 + $0x3b8] sm:$0xff]
    %v178 = vld [vmem:[#allocation5 + $0x3c0] sm:$0xff]
    %v179 = vld [vmem:[#allocation5 + $0x3c8] sm:$0xff]
    %v180 = vld [vmem:[#allocation5 + $0x3d0] sm:$0xff]
    %v181 = vld [vmem:[#allocation5 + $0x3d8] sm:$0xff]
    %v182 = vld [vmem:[#allocation5 + $0x3e0] sm:$0xff]
    %v183 = vld [vmem:[#allocation5 + $0x3e8] sm:$0xff]
    %v184 = vld [vmem:[#allocation5 + $0x3f0] sm:$0xff]
    %v185 = vld [vmem:[#allocation5 + $0x3f8] sm:$0xff]
    %v186 = vld [vmem:[#allocation5 + $0x400] sm:$0xff]
    %v187 = vld [vmem:[#allocation5 + $0x408] sm:$0xff]
    %v188 = vld [vmem:[#allocation5 + $0x410] sm:$0xff]
    %v189 = vld [vmem:[#allocation5 + $0x418] sm:$0xff]
    %v190 = vld [vmem:[#allocation5 + $0x420] sm:$0xff]
    %v191 = vld [vmem:[#allocation5 + $0x428] sm:$0xff]
    %v192 = vld [vmem:[#allocation5 + $0x430] sm:$0xff]
    %v193 = vld [vmem:[#allocation5 + $0x438] sm:$0xff]
    %v194 = vld [vmem:[#allocation5 + $0x440] sm:$0xff]
    %v195 = vld [vmem:[#allocation5 + $0x448] sm:$0xff]
    %v196 = vld [vmem:[#allocation5 + $0x450] sm:$0xff]
    %v197 = vld [vmem:[#allocation5 + $0x458] sm:$0xff]
    %v198 = vld [vmem:[#allocation5 + $0x460] sm:$0xff]
    %v199 = vld [vmem:[#allocation5 + $0x468] sm:$0xff]
    %v200 = vld [vmem:[#allocation5 + $0x470] sm:$0xff]
    %v201 = vld [vmem:[#allocation5 + $0x478] sm:$0xff]
    %v202 = vld [vmem:[#allocation5 + $0x480] sm:$0xff]
    %v203 = vld [vmem:[#allocation5 + $0x488] sm:$0xff]
    %v204 = vld [vmem:[#allocation5 + $0x490] sm:$0xff]
    %v205 = vld [vmem:[#allocation5 + $0x498] sm:$0xff]
    %v206 = vld [vmem:[#allocation5 + $0x4a0] sm:$0xff]
    %v207 = vld [vmem:[#allocation5 + $0x4a8] sm:$0xff]
    %v208 = vld [vmem:[#allocation5 + $0x4b0] sm:$0xff]
    %v209 = vld [vmem:[#allocation5 + $0x4b8] sm:$0xff]
    %v210 = vld [vmem:[#allocation5 + $0x4c0] sm:$0xff]
    %v211 = vld [vmem:[#allocation5 + $0x4c8] sm:$0xff]
    %v212 = vld [vmem:[#allocation5 + $0x4d0] sm:$0xff]
    %v213 = vld [vmem:[#allocation5 + $0x4d8] sm:$0xff]
    %v214 = vld [vmem:[#allocation5 + $0x4e0] sm:$0xff]
    %v215 = vld [vmem:[#allocation5 + $0x4e8] sm:$0xff]
    %v216 = vld [vmem:[#allocation5 + $0x4f0] sm:$0xff]
    %v217 = vld [vmem:[#allocation5 + $0x4f8] sm:$0xff]
    %v218 = vld [vmem:[#allocation5 + $0x500] sm:$0xff]
    %v219 = vld [vmem:[#allocation5 + $0x508] sm:$0xff]
    %v220 = vld [vmem:[#allocation5 + $0x510] sm:$0xff]
    %v221 = vld [vmem:[#allocation5 + $0x518] sm:$0xff]
    %v222 = vld [vmem:[#allocation5 + $0x520] sm:$0xff]
    %v223 = vld [vmem:[#allocation5 + $0x528] sm:$0xff]
    %v224 = vld [vmem:[#allocation5 + $0x530] sm:$0xff]
    %v225 = vld [vmem:[#allocation5 + $0x538] sm:$0xff]
    %v226 = vld [vmem:[#allocation5 + $0x540] sm:$0xff]
    %v227 = vld [vmem:[#allocation5 + $0x548] sm:$0xff]
    %v228 = vld [vmem:[#allocation5 + $0x550] sm:$0xff]
    %v229 = vld [vmem:[#allocation5 + $0x558] sm:$0xff]
    %v230 = vld [vmem:[#allocation5 + $0x560] sm:$0xff]
    %v231 = vld [vmem:[#allocation5 + $0x568] sm:$0xff]
    %v232 = vld [vmem:[#allocation5 + $0x570] sm:$0xff]
    %v233 = vld [vmem:[#allocation5 + $0x578] sm:$0xff]
    %v234 = vld [vmem:[#allocation5 + $0x580] sm:$0xff]
    %v235 = vld [vmem:[#allocation5 + $0x588] sm:$0xff]
    %v236 = vld [vmem:[#allocation5 + $0x590] sm:$0xff]
    %v237 = vld [vmem:[#allocation5 + $0x598] sm:$0xff]
    %v238 = vld [vmem:[#allocation5 + $0x5a0] sm:$0xff]
    %v239 = vld [vmem:[#allocation5 + $0x5a8] sm:$0xff]
    %v240 = vld [vmem:[#allocation5 + $0x5b0] sm:$0xff]
    %v241 = vld [vmem:[#allocation5 + $0x5b8] sm:$0xff]
    %v242 = vld [vmem:[#allocation5 + $0x5c0] sm:$0xff]
    %v243 = vld [vmem:[#allocation5 + $0x5c8] sm:$0xff]
    %v244 = vld [vmem:[#allocation5 + $0x5d0] sm:$0xff]
    %v245 = vld [vmem:[#allocation5 + $0x5d8] sm:$0xff]
    %v246 = vld [vmem:[#allocation5 + $0x5e0] sm:$0xff]
    %v247 = vld [vmem:[#allocation5 + $0x5e8] sm:$0xff]
    %v248 = vld [vmem:[#allocation5 + $0x5f0] sm:$0xff]
    %v249 = vld [vmem:[#allocation5 + $0x5f8] sm:$0xff]
    %v250 = vld [vmem:[#allocation5 + $0x600] sm:$0xff]
    %v251 = vld [vmem:[#allocation5 + $0x608] sm:$0xff]
    %v252 = vld [vmem:[#allocation5 + $0x610] sm:$0xff]
    %v253 = vld [vmem:[#allocation5 + $0x618] sm:$0xff]
    %v254 = vld [vmem:[#allocation5 + $0x620] sm:$0xff]
    %v255 = vld [vmem:[#allocation5 + $0x628] sm:$0xff]
    %v256 = vld [vmem:[#allocation5 + $0x630] sm:$0xff]
    %v257 = vld [vmem:[#allocation5 + $0x638] sm:$0xff]
    %v258 = vld [vmem:[#allocation5 + $0x640] sm:$0xff]
    %v259 = vld [vmem:[#allocation5 + $0x648] sm:$0xff]
    %v260 = vld [vmem:[#allocation5 + $0x650] sm:$0xff]
    %v261 = vld [vmem:[#allocation5 + $0x658] sm:$0xff]
    %v262 = vld [vmem:[#allocation5 + $0x660] sm:$0xff]
    %v263 = vld [vmem:[#allocation5 + $0x668] sm:$0xff]
    %v264 = vld [vmem:[#allocation5 + $0x670] sm:$0xff]
    %v265 = vld [vmem:[#allocation5 + $0x678] sm:$0xff]
    %v266 = vld [vmem:[#allocation5 + $0x680] sm:$0xff]
    %v267 = vld [vmem:[#allocation5 + $0x688] sm:$0xff]
    %v268 = vld [vmem:[#allocation5 + $0x690] sm:$0xff]
    %v269 = vld [vmem:[#allocation5 + $0x698] sm:$0xff]
    %v270 = vld [vmem:[#allocation5 + $0x6a0] sm:$0xff]
    %v271 = vld [vmem:[#allocation5 + $0x6a8] sm:$0xff]
    %v272 = vld [vmem:[#allocation5 + $0x6b0] sm:$0xff]
    %v273 = vld [vmem:[#allocation5 + $0x6b8] sm:$0xff]
    %v274 = vld [vmem:[#allocation5 + $0x6c0] sm:$0xff]
    %v275 = vld [vmem:[#allocation5 + $0x6c8] sm:$0xff]
    %v276 = vld [vmem:[#allocation5 + $0x6d0] sm:$0xff]
    %v277 = vld [vmem:[#allocation5 + $0x6d8] sm:$0xff]
    %v278 = vld [vmem:[#allocation5 + $0x6e0] sm:$0xff]
    %v279 = vld [vmem:[#allocation5 + $0x6e8] sm:$0xff]
    %v280 = vld [vmem:[#allocation5 + $0x6f0] sm:$0xff]
    %v281 = vld [vmem:[#allocation5 + $0x6f8] sm:$0xff]
    %v282 = vld [vmem:[#allocation5 + $0x700] sm:$0xff]
    %v283 = vld [vmem:[#allocation5 + $0x708] sm:$0xff]
    %v284 = vld [vmem:[#allocation5 + $0x710] sm:$0xff]
    %v285 = vld [vmem:[#allocation5 + $0x718] sm:$0xff]
    %v286 = vld [vmem:[#allocation5 + $0x720] sm:$0xff]
    %v287 = vld [vmem:[#allocation5 + $0x728] sm:$0xff]
    %v288 = vld [vmem:[#allocation5 + $0x730] sm:$0xff]
    %v289 = vld [vmem:[#allocation5 + $0x738] sm:$0xff]
    %v290 = vld [vmem:[#allocation5 + $0x740] sm:$0xff]
    %v291 = vld [vmem:[#allocation5 + $0x748] sm:$0xff]
    %v292 = vld [vmem:[#allocation5 + $0x750] sm:$0xff]
    %v293 = vld [vmem:[#allocation5 + $0x758] sm:$0xff]
    %v294 = vld [vmem:[#allocation5 + $0x760] sm:$0xff]
    %v295 = vld [vmem:[#allocation5 + $0x768] sm:$0xff]
    %v296 = vld [vmem:[#allocation5 + $0x770] sm:$0xff]
    %v297 = vld [vmem:[#allocation5 + $0x778] sm:$0xff]
    %v298 = vld [vmem:[#allocation5 + $0x780] sm:$0xff]
    %v299 = vld [vmem:[#allocation5 + $0x788] sm:$0xff]
    %v300 = vld [vmem:[#allocation5 + $0x790] sm:$0xff]
    %v301 = vld [vmem:[#allocation5 + $0x798] sm:$0xff]
    %v302 = vld [vmem:[#allocation5 + $0x7a0] sm:$0xff]
    %v303 = vld [vmem:[#allocation5 + $0x7a8] sm:$0xff]
    %v304 = vld [vmem:[#allocation5 + $0x7b0] sm:$0xff]
    %v305 = vld [vmem:[#allocation5 + $0x7b8] sm:$0xff]
    %v306 = vld [vmem:[#allocation5 + $0x7c0] sm:$0xff]
    %v307 = vld [vmem:[#allocation5 + $0x7c8] sm:$0xff]
    %v308 = vld [vmem:[#allocation5 + $0x7d0] sm:$0xff]
    %v309 = vld [vmem:[#allocation5 + $0x7d8] sm:$0xff]
    %v310 = vld [vmem:[#allocation5 + $0x7e0] sm:$0xff]
    %v311 = vld [vmem:[#allocation5 + $0x7e8] sm:$0xff]
    %v312 = vld [vmem:[#allocation5 + $0x7f0] sm:$0xff]
    %v313 = vld [vmem:[#allocation5 + $0x7f8] sm:$0xff]
    %314 = vmatprep.subr.mxu0 %v119
    %315 = vmatpush1.msra.mxu0 %v118
    %316 = vmatprep.subr.mxu0 %v115
    %317 = vmatpush1.msra.mxu0 %v114
    %318 = vmatprep.subr.mxu0 %v111
    %319 = vmatpush1.msra.mxu0 %v110
    %320 = vmatprep.subr.mxu0 %v107
    %321 = vmatpush1.msra.mxu0 %v106
    %322 = vmatprep.subr.mxu0 %v103
    %323 = vmatpush1.msra.mxu0 %v102
    %324 = vmatprep.subr.mxu0 %v99
    %325 = vmatpush1.msra.mxu0 %v98
    %326 = vmatprep.subr.mxu0 %v95
    %327 = vmatpush1.msra.mxu0 %v94
    %328 = vmatprep.subr.mxu0 %v91
    %329 = vmatpush1.msra.mxu0 %v90
    %330 = vmatprep.subr.mxu0 %v87
    %331 = vmatpush1.msra.mxu0 %v86
    %332 = vmatprep.subr.mxu0 %v83
    %333 = vmatpush1.msra.mxu0 %v82
    %334 = vmatprep.subr.mxu0 %v79
    %335 = vmatpush1.msra.mxu0 %v78
    %336 = vmatprep.subr.mxu0 %v75
    %337 = vmatpush1.msra.mxu0 %v74
    %338 = vmatprep.subr.mxu0 %v71
    %339 = vmatpush1.msra.mxu0 %v70
    %340 = vmatprep.subr.mxu0 %v67
    %341 = vmatpush1.msra.mxu0 %v66
    %342 = vmatprep.subr.mxu0 %v63
    %343 = vmatpush1.msra.mxu0 %v62
    %344 = vmatprep.subr.mxu0 %v59
    %345 = vmatpush1.msra.mxu0 %v58
    %346 = vmatprep.subr.mxu0 %v183
    %347 = vmatpush2.msra.mxu0 %v182
    %348 = vmatprep.subr.mxu0 %v179
    %349 = vmatpush2.msra.mxu0 %v178
    %350 = vmatprep.subr.mxu0 %v175
    %351 = vmatpush2.msra.mxu0 %v174
    %352 = vmatprep.subr.mxu0 %v171
    %353 = vmatpush2.msra.mxu0 %v170
    %354 = vmatprep.subr.mxu0 %v167
    %355 = vmatpush2.msra.mxu0 %v166
    %356 = vmatprep.subr.mxu0 %v163
    %357 = vmatpush2.msra.mxu0 %v162
    %358 = vmatprep.subr.mxu0 %v159
    %359 = vmatpush2.msra.mxu0 %v158
    %360 = vmatprep.subr.mxu0 %v155
    %361 = vmatpush2.msra.mxu0 %v154
    %362 = vmatprep.subr.mxu0 %v151
    %363 = vmatpush2.msra.mxu0 %v150
    %364 = vmatprep.subr.mxu0 %v147
    %365 = vmatpush2.msra.mxu0 %v146
    %366 = vmatprep.subr.mxu0 %v143
    %367 = vmatpush2.msra.mxu0 %v142
    %368 = vmatprep.subr.mxu0 %v139
    %369 = vmatpush2.msra.mxu0 %v138
    %370 = vmatprep.subr.mxu0 %v135
    %371 = vmatpush2.msra.mxu0 %v134
    %372 = vmatprep.subr.mxu0 %v131
    %373 = vmatpush2.msra.mxu0 %v130
    %374 = vmatprep.subr.mxu0 %v127
    %375 = vmatpush2.msra.mxu0 %v126
    %376 = vmatprep.subr.mxu0 %v123
    %377 = vmatpush2.msra.mxu0 %v122
    %378 = vmatprep.mubr.f32.mxu0 %v55
    %379 = vmatmul.mubr.f32.gmra.mxu0 %v54
    %v380 = vpop.f32.mrf.mxu0
    %v381 = vadd.f32 0.0, %v380
    %v382 = vpop.f32.mrf.mxu0
    %v383 = vadd.f32 0.0, %v382
    %384 = vdwg.mxu0
    %385 = vmatprep.subr.mxu0 %v247
    %386 = vmatpush1.msra.mxu0 %v246
    %387 = vmatprep.subr.mxu0 %v243
    %388 = vmatpush1.msra.mxu0 %v242
    %389 = vmatprep.subr.mxu0 %v239
    %390 = vmatpush1.msra.mxu0 %v238
    %391 = vmatprep.subr.mxu0 %v235
    %392 = vmatpush1.msra.mxu0 %v234
    %393 = vmatprep.subr.mxu0 %v231
    %394 = vmatpush1.msra.mxu0 %v230
    %395 = vmatprep.subr.mxu0 %v227
    %396 = vmatpush1.msra.mxu0 %v226
    %397 = vmatprep.subr.mxu0 %v223
    %398 = vmatpush1.msra.mxu0 %v222
    %399 = vmatprep.subr.mxu0 %v219
    %400 = vmatpush1.msra.mxu0 %v218
    %401 = vmatprep.subr.mxu0 %v215
    %402 = vmatpush1.msra.mxu0 %v214
    %403 = vmatprep.subr.mxu0 %v211
    %404 = vmatpush1.msra.mxu0 %v210
    %405 = vmatprep.subr.mxu0 %v207
    %406 = vmatpush1.msra.mxu0 %v206
    %407 = vmatprep.subr.mxu0 %v203
    %408 = vmatpush1.msra.mxu0 %v202
    %409 = vmatprep.subr.mxu0 %v199
    %410 = vmatpush1.msra.mxu0 %v198
    %411 = vmatprep.subr.mxu0 %v195
    %412 = vmatpush1.msra.mxu0 %v194
    %413 = vmatprep.subr.mxu0 %v191
    %414 = vmatpush1.msra.mxu0 %v190
    %415 = vmatprep.subr.mxu0 %v187
    %416 = vmatpush1.msra.mxu0 %v186
    %417 = vmatprep.subr.mxu0 %v311
    %418 = vmatpush2.msra.mxu0 %v310
    %419 = vmatprep.subr.mxu0 %v307
    %420 = vmatpush2.msra.mxu0 %v306
    %421 = vmatprep.subr.mxu0 %v303
    %422 = vmatpush2.msra.mxu0 %v302
    %423 = vmatprep.subr.mxu0 %v299
    %424 = vmatpush2.msra.mxu0 %v298
    %425 = vmatprep.subr.mxu0 %v295
    %426 = vmatpush2.msra.mxu0 %v294
    %427 = vmatprep.subr.mxu0 %v291
    %428 = vmatpush2.msra.mxu0 %v290
    %429 = vmatprep.subr.mxu0 %v287
    %430 = vmatpush2.msra.mxu0 %v286
    %431 = vmatprep.subr.mxu0 %v283
    %432 = vmatpush2.msra.mxu0 %v282
    %433 = vmatprep.subr.mxu0 %v279
    %434 = vmatpush2.msra.mxu0 %v278
    %435 = vmatprep.subr.mxu0 %v275
    %436 = vmatpush2.msra.mxu0 %v274
    %437 = vmatprep.subr.mxu0 %v271
    %438 = vmatpush2.msra.mxu0 %v270
    %439 = vmatprep.subr.mxu0 %v267
    %440 = vmatpush2.msra.mxu0 %v266
    %441 = vmatprep.subr.mxu0 %v263
    %442 = vmatpush2.msra.mxu0 %v262
    %443 = vmatprep.subr.mxu0 %v259
    %444 = vmatpush2.msra.mxu0 %v258
    %445 = vmatprep.subr.mxu0 %v255
    %446 = vmatpush2.msra.mxu0 %v254
    %447 = vmatprep.subr.mxu0 %v251
    %448 = vmatpush2.msra.mxu0 %v250
    %449 = vmatprep.mubr.f32.mxu0 %v57
    %450 = vmatmul.mubr.f32.gmra.mxu0 %v56
    %v451 = vpop.f32.mrf.mxu0
    %v452 = vadd.f32 %v381, %v451
    %v453 = vpop.f32.mrf.mxu0
    %v454 = vadd.f32 %v383, %v453
    %455 = vdwg.mxu0
    %456 = vmatprep.subr.mxu0 %v121
    %457 = vmatpush1.msra.mxu0 %v120
    %458 = vmatprep.subr.mxu0 %v117
    %459 = vmatpush1.msra.mxu0 %v116
    %460 = vmatprep.subr.mxu0 %v113
    %461 = vmatpush1.msra.mxu0 %v112
    %462 = vmatprep.subr.mxu0 %v109
    %463 = vmatpush1.msra.mxu0 %v108
    %464 = vmatprep.subr.mxu0 %v105
    %465 = vmatpush1.msra.mxu0 %v104
    %466 = vmatprep.subr.mxu0 %v101
    %467 = vmatpush1.msra.mxu0 %v100
    %468 = vmatprep.subr.mxu0 %v97
    %469 = vmatpush1.msra.mxu0 %v96
    %470 = vmatprep.subr.mxu0 %v93
    %471 = vmatpush1.msra.mxu0 %v92
    %472 = vmatprep.subr.mxu0 %v89
    %473 = vmatpush1.msra.mxu0 %v88
    %474 = vmatprep.subr.mxu0 %v85
    %475 = vmatpush1.msra.mxu0 %v84
    %476 = vmatprep.subr.mxu0 %v81
    %477 = vmatpush1.msra.mxu0 %v80
    %478 = vmatprep.subr.mxu0 %v77
    %479 = vmatpush1.msra.mxu0 %v76
    %480 = vmatprep.subr.mxu0 %v73
    %481 = vmatpush1.msra.mxu0 %v72
    %482 = vmatprep.subr.mxu0 %v69
    %483 = vmatpush1.msra.mxu0 %v68
    %484 = vmatprep.subr.mxu0 %v65
    %485 = vmatpush1.msra.mxu0 %v64
    %486 = vmatprep.subr.mxu0 %v61
    %487 = vmatpush1.msra.mxu0 %v60
    %488 = vmatprep.subr.mxu0 %v185
    %489 = vmatpush2.msra.mxu0 %v184
    %490 = vmatprep.subr.mxu0 %v181
    %491 = vmatpush2.msra.mxu0 %v180
    %492 = vmatprep.subr.mxu0 %v177
    %493 = vmatpush2.msra.mxu0 %v176
    %494 = vmatprep.subr.mxu0 %v173
    %495 = vmatpush2.msra.mxu0 %v172
    %496 = vmatprep.subr.mxu0 %v169
    %497 = vmatpush2.msra.mxu0 %v168
    %498 = vmatprep.subr.mxu0 %v165
    %499 = vmatpush2.msra.mxu0 %v164
    %500 = vmatprep.subr.mxu0 %v161
    %501 = vmatpush2.msra.mxu0 %v160
    %502 = vmatprep.subr.mxu0 %v157
    %503 = vmatpush2.msra.mxu0 %v156
    %504 = vmatprep.subr.mxu0 %v153
    %505 = vmatpush2.msra.mxu0 %v152
    %506 = vmatprep.subr.mxu0 %v149
    %507 = vmatpush2.msra.mxu0 %v148
    %508 = vmatprep.subr.mxu0 %v145
    %509 = vmatpush2.msra.mxu0 %v144
    %510 = vmatprep.subr.mxu0 %v141
    %511 = vmatpush2.msra.mxu0 %v140
    %512 = vmatprep.subr.mxu0 %v137
    %513 = vmatpush2.msra.mxu0 %v136
    %514 = vmatprep.subr.mxu0 %v133
    %515 = vmatpush2.msra.mxu0 %v132
    %516 = vmatprep.subr.mxu0 %v129
    %517 = vmatpush2.msra.mxu0 %v128
    %518 = vmatprep.subr.mxu0 %v125
    %519 = vmatpush2.msra.mxu0 %v124
    %520 = vmatprep.mubr.f32.mxu0 %v55
    %521 = vmatmul.mubr.f32.gmra.mxu0 %v54
    %v522 = vpop.f32.mrf.mxu0
    %v523 = vadd.f32 0.0, %v522
    %v524 = vpop.f32.mrf.mxu0
    %v525 = vadd.f32 0.0, %v524
    %526 = vdwg.mxu0
    %527 = vmatprep.subr.mxu0 %v249
    %528 = vmatpush1.msra.mxu0 %v248
    %529 = vmatprep.subr.mxu0 %v245
    %530 = vmatpush1.msra.mxu0 %v244
    %531 = vmatprep.subr.mxu0 %v241
    %532 = vmatpush1.msra.mxu0 %v240
    %533 = vmatprep.subr.mxu0 %v237
    %534 = vmatpush1.msra.mxu0 %v236
    %535 = vmatprep.subr.mxu0 %v233
    %536 = vmatpush1.msra.mxu0 %v232
    %537 = vmatprep.subr.mxu0 %v229
    %538 = vmatpush1.msra.mxu0 %v228
    %539 = vmatprep.subr.mxu0 %v225
    %540 = vmatpush1.msra.mxu0 %v224
    %541 = vmatprep.subr.mxu0 %v221
    %542 = vmatpush1.msra.mxu0 %v220
    %543 = vmatprep.subr.mxu0 %v217
    %544 = vmatpush1.msra.mxu0 %v216
    %545 = vmatprep.subr.mxu0 %v213
    %546 = vmatpush1.msra.mxu0 %v212
    %547 = vmatprep.subr.mxu0 %v209
    %548 = vmatpush1.msra.mxu0 %v208
    %549 = vmatprep.subr.mxu0 %v205
    %550 = vmatpush1.msra.mxu0 %v204
    %551 = vmatprep.subr.mxu0 %v201
    %552 = vmatpush1.msra.mxu0 %v200
    %553 = vmatprep.subr.mxu0 %v197
    %554 = vmatpush1.msra.mxu0 %v196
    %555 = vmatprep.subr.mxu0 %v193
    %556 = vmatpush1.msra.mxu0 %v192
    %557 = vmatprep.subr.mxu0 %v189
    %558 = vmatpush1.msra.mxu0 %v188
    %559 = vmatprep.subr.mxu0 %v313
    %560 = vmatpush2.msra.mxu0 %v312
    %561 = vmatprep.subr.mxu0 %v309
    %562 = vmatpush2.msra.mxu0 %v308
    %563 = vmatprep.subr.mxu0 %v305
    %564 = vmatpush2.msra.mxu0 %v304
    %565 = vmatprep.subr.mxu0 %v301
    %566 = vmatpush2.msra.mxu0 %v300
    %567 = vmatprep.subr.mxu0 %v297
    %568 = vmatpush2.msra.mxu0 %v296
    %569 = vmatprep.subr.mxu0 %v293
    %570 = vmatpush2.msra.mxu0 %v292
    %571 = vmatprep.subr.mxu0 %v289
    %572 = vmatpush2.msra.mxu0 %v288
    %573 = vmatprep.subr.mxu0 %v285
    %574 = vmatpush2.msra.mxu0 %v284
    %575 = vmatprep.subr.mxu0 %v281
    %576 = vmatpush2.msra.mxu0 %v280
    %577 = vmatprep.subr.mxu0 %v277
    %578 = vmatpush2.msra.mxu0 %v276
    %579 = vmatprep.subr.mxu0 %v273
    %580 = vmatpush2.msra.mxu0 %v272
    %581 = vmatprep.subr.mxu0 %v269
    %582 = vmatpush2.msra.mxu0 %v268
    %583 = vmatprep.subr.mxu0 %v265
    %584 = vmatpush2.msra.mxu0 %v264
    %585 = vmatprep.subr.mxu0 %v261
    %586 = vmatpush2.msra.mxu0 %v260
    %587 = vmatprep.subr.mxu0 %v257
    %588 = vmatpush2.msra.mxu0 %v256
    %589 = vmatprep.subr.mxu0 %v253
    %590 = vmatpush2.msra.mxu0 %v252
    %591 = vmatprep.mubr.f32.mxu0 %v57
    %592 = vmatmul.mubr.f32.gmra.mxu0 %v56
    %v593 = vpop.f32.mrf.mxu0
    %v594 = vadd.f32 %v523, %v593
    %v595 = vpop.f32.mrf.mxu0
    %v596 = vadd.f32 %v525, %v595
    %597 = vdwg.mxu0
    %v598 = vtanh.pop %v452
    %v599 = vtanh.pop %v454
    %v600 = vtanh.pop %v594
    %v601 = vtanh.pop %v596
    %v602 = vld [vmem:[#allocation7] sm:$0xff]
    %v603 = vld [vmem:[#allocation7 + $0x8] sm:$0xff]
    %v604 = vld [vmem:[#allocation7 + $0x10] sm:$0xff]
    %v605 = vld [vmem:[#allocation7 + $0x18] sm:$0xff]
    %v606 = vld [vmem:[#allocation7 + $0x20] sm:$0xff]
    %v607 = vld [vmem:[#allocation7 + $0x28] sm:$0xff]
    %v608 = vld [vmem:[#allocation7 + $0x30] sm:$0xff]
    %v609 = vld [vmem:[#allocation7 + $0x38] sm:$0xff]
    %v610 = vld [vmem:[#allocation7 + $0x40] sm:$0xff]
    %v611 = vld [vmem:[#allocation7 + $0x48] sm:$0xff]
    %v612 = vld [vmem:[#allocation7 + $0x50] sm:$0xff]
    %v613 = vld [vmem:[#allocation7 + $0x58] sm:$0xff]
    %v614 = vld [vmem:[#allocation7 + $0x60] sm:$0xff]
    %v615 = vld [vmem:[#allocation7 + $0x68] sm:$0xff]
    %v616 = vld [vmem:[#allocation7 + $0x70] sm:$0xff]
    %v617 = vld [vmem:[#allocation7 + $0x78] sm:$0xff]
    %v618 = vld [vmem:[#allocation7 + $0x80] sm:$0xff]
    %v619 = vld [vmem:[#allocation7 + $0x88] sm:$0xff]
    %v620 = vld [vmem:[#allocation7 + $0x90] sm:$0xff]
    %v621 = vld [vmem:[#allocation7 + $0x98] sm:$0xff]
    %v622 = vld [vmem:[#allocation7 + $0xa0] sm:$0xff]
    %v623 = vld [vmem:[#allocation7 + $0xa8] sm:$0xff]
    %v624 = vld [vmem:[#allocation7 + $0xb0] sm:$0xff]
    %v625 = vld [vmem:[#allocation7 + $0xb8] sm:$0xff]
    %v626 = vld [vmem:[#allocation7 + $0xc0] sm:$0xff]
    %v627 = vld [vmem:[#allocation7 + $0xc8] sm:$0xff]
    %v628 = vld [vmem:[#allocation7 + $0xd0] sm:$0xff]
    %v629 = vld [vmem:[#allocation7 + $0xd8] sm:$0xff]
    %v630 = vld [vmem:[#allocation7 + $0xe0] sm:$0xff]
    %v631 = vld [vmem:[#allocation7 + $0xe8] sm:$0xff]
    %v632 = vld [vmem:[#allocation7 + $0xf0] sm:$0xff]
    %v633 = vld [vmem:[#allocation7 + $0xf8] sm:$0xff]
    %v634 = vld [vmem:[#allocation7 + $0x100] sm:$0xff]
    %v635 = vld [vmem:[#allocation7 + $0x108] sm:$0xff]
    %v636 = vld [vmem:[#allocation7 + $0x110] sm:$0xff]
    %v637 = vld [vmem:[#allocation7 + $0x118] sm:$0xff]
    %v638 = vld [vmem:[#allocation7 + $0x120] sm:$0xff]
    %v639 = vld [vmem:[#allocation7 + $0x128] sm:$0xff]
    %v640 = vld [vmem:[#allocation7 + $0x130] sm:$0xff]
    %v641 = vld [vmem:[#allocation7 + $0x138] sm:$0xff]
    %v642 = vld [vmem:[#allocation7 + $0x140] sm:$0xff]
    %v643 = vld [vmem:[#allocation7 + $0x148] sm:$0xff]
    %v644 = vld [vmem:[#allocation7 + $0x150] sm:$0xff]
    %v645 = vld [vmem:[#allocation7 + $0x158] sm:$0xff]
    %v646 = vld [vmem:[#allocation7 + $0x160] sm:$0xff]
    %v647 = vld [vmem:[#allocation7 + $0x168] sm:$0xff]
    %v648 = vld [vmem:[#allocation7 + $0x170] sm:$0xff]
    %v649 = vld [vmem:[#allocation7 + $0x178] sm:$0xff]
    %v650 = vld [vmem:[#allocation7 + $0x180] sm:$0xff]
    %v651 = vld [vmem:[#allocation7 + $0x188] sm:$0xff]
    %v652 = vld [vmem:[#allocation7 + $0x190] sm:$0xff]
    %v653 = vld [vmem:[#allocation7 + $0x198] sm:$0xff]
    %v654 = vld [vmem:[#allocation7 + $0x1a0] sm:$0xff]
    %v655 = vld [vmem:[#allocation7 + $0x1a8] sm:$0xff]
    %v656 = vld [vmem:[#allocation7 + $0x1b0] sm:$0xff]
    %v657 = vld [vmem:[#allocation7 + $0x1b8] sm:$0xff]
    %v658 = vld [vmem:[#allocation7 + $0x1c0] sm:$0xff]
    %v659 = vld [vmem:[#allocation7 + $0x1c8] sm:$0xff]
    %v660 = vld [vmem:[#allocation7 + $0x1d0] sm:$0xff]
    %v661 = vld [vmem:[#allocation7 + $0x1d8] sm:$0xff]
    %v662 = vld [vmem:[#allocation7 + $0x1e0] sm:$0xff]
    %v663 = vld [vmem:[#allocation7 + $0x1e8] sm:$0xff]
    %v664 = vld [vmem:[#allocation7 + $0x1f0] sm:$0xff]
    %v665 = vld [vmem:[#allocation7 + $0x1f8] sm:$0xff]
    %v666 = vld [vmem:[#allocation7 + $0x200] sm:$0xff]
    %v667 = vld [vmem:[#allocation7 + $0x208] sm:$0xff]
    %v668 = vld [vmem:[#allocation7 + $0x210] sm:$0xff]
    %v669 = vld [vmem:[#allocation7 + $0x218] sm:$0xff]
    %v670 = vld [vmem:[#allocation7 + $0x220] sm:$0xff]
    %v671 = vld [vmem:[#allocation7 + $0x228] sm:$0xff]
    %v672 = vld [vmem:[#allocation7 + $0x230] sm:$0xff]
    %v673 = vld [vmem:[#allocation7 + $0x238] sm:$0xff]
    %v674 = vld [vmem:[#allocation7 + $0x240] sm:$0xff]
    %v675 = vld [vmem:[#allocation7 + $0x248] sm:$0xff]
    %v676 = vld [vmem:[#allocation7 + $0x250] sm:$0xff]
    %v677 = vld [vmem:[#allocation7 + $0x258] sm:$0xff]
    %v678 = vld [vmem:[#allocation7 + $0x260] sm:$0xff]
    %v679 = vld [vmem:[#allocation7 + $0x268] sm:$0xff]
    %v680 = vld [vmem:[#allocation7 + $0x270] sm:$0xff]
    %v681 = vld [vmem:[#allocation7 + $0x278] sm:$0xff]
    %v682 = vld [vmem:[#allocation7 + $0x280] sm:$0xff]
    %v683 = vld [vmem:[#allocation7 + $0x288] sm:$0xff]
    %v684 = vld [vmem:[#allocation7 + $0x290] sm:$0xff]
    %v685 = vld [vmem:[#allocation7 + $0x298] sm:$0xff]
    %v686 = vld [vmem:[#allocation7 + $0x2a0] sm:$0xff]
    %v687 = vld [vmem:[#allocation7 + $0x2a8] sm:$0xff]
    %v688 = vld [vmem:[#allocation7 + $0x2b0] sm:$0xff]
    %v689 = vld [vmem:[#allocation7 + $0x2b8] sm:$0xff]
    %v690 = vld [vmem:[#allocation7 + $0x2c0] sm:$0xff]
    %v691 = vld [vmem:[#allocation7 + $0x2c8] sm:$0xff]
    %v692 = vld [vmem:[#allocation7 + $0x2d0] sm:$0xff]
    %v693 = vld [vmem:[#allocation7 + $0x2d8] sm:$0xff]
    %v694 = vld [vmem:[#allocation7 + $0x2e0] sm:$0xff]
    %v695 = vld [vmem:[#allocation7 + $0x2e8] sm:$0xff]
    %v696 = vld [vmem:[#allocation7 + $0x2f0] sm:$0xff]
    %v697 = vld [vmem:[#allocation7 + $0x2f8] sm:$0xff]
    %v698 = vld [vmem:[#allocation7 + $0x300] sm:$0xff]
    %v699 = vld [vmem:[#allocation7 + $0x308] sm:$0xff]
    %v700 = vld [vmem:[#allocation7 + $0x310] sm:$0xff]
    %v701 = vld [vmem:[#allocation7 + $0x318] sm:$0xff]
    %v702 = vld [vmem:[#allocation7 + $0x320] sm:$0xff]
    %v703 = vld [vmem:[#allocation7 + $0x328] sm:$0xff]
    %v704 = vld [vmem:[#allocation7 + $0x330] sm:$0xff]
    %v705 = vld [vmem:[#allocation7 + $0x338] sm:$0xff]
    %v706 = vld [vmem:[#allocation7 + $0x340] sm:$0xff]
    %v707 = vld [vmem:[#allocation7 + $0x348] sm:$0xff]
    %v708 = vld [vmem:[#allocation7 + $0x350] sm:$0xff]
    %v709 = vld [vmem:[#allocation7 + $0x358] sm:$0xff]
    %v710 = vld [vmem:[#allocation7 + $0x360] sm:$0xff]
    %v711 = vld [vmem:[#allocation7 + $0x368] sm:$0xff]
    %v712 = vld [vmem:[#allocation7 + $0x370] sm:$0xff]
    %v713 = vld [vmem:[#allocation7 + $0x378] sm:$0xff]
    %v714 = vld [vmem:[#allocation7 + $0x380] sm:$0xff]
    %v715 = vld [vmem:[#allocation7 + $0x388] sm:$0xff]
    %v716 = vld [vmem:[#allocation7 + $0x390] sm:$0xff]
    %v717 = vld [vmem:[#allocation7 + $0x398] sm:$0xff]
    %v718 = vld [vmem:[#allocation7 + $0x3a0] sm:$0xff]
    %v719 = vld [vmem:[#allocation7 + $0x3a8] sm:$0xff]
    %v720 = vld [vmem:[#allocation7 + $0x3b0] sm:$0xff]
    %v721 = vld [vmem:[#allocation7 + $0x3b8] sm:$0xff]
    %v722 = vld [vmem:[#allocation7 + $0x3c0] sm:$0xff]
    %v723 = vld [vmem:[#allocation7 + $0x3c8] sm:$0xff]
    %v724 = vld [vmem:[#allocation7 + $0x3d0] sm:$0xff]
    %v725 = vld [vmem:[#allocation7 + $0x3d8] sm:$0xff]
    %v726 = vld [vmem:[#allocation7 + $0x3e0] sm:$0xff]
    %v727 = vld [vmem:[#allocation7 + $0x3e8] sm:$0xff]
    %v728 = vld [vmem:[#allocation7 + $0x3f0] sm:$0xff]
    %v729 = vld [vmem:[#allocation7 + $0x3f8] sm:$0xff]
    %v730 = vld [vmem:[#allocation7 + $0x400] sm:$0xff]
    %v731 = vld [vmem:[#allocation7 + $0x408] sm:$0xff]
    %v732 = vld [vmem:[#allocation7 + $0x410] sm:$0xff]
    %v733 = vld [vmem:[#allocation7 + $0x418] sm:$0xff]
    %v734 = vld [vmem:[#allocation7 + $0x420] sm:$0xff]
    %v735 = vld [vmem:[#allocation7 + $0x428] sm:$0xff]
    %v736 = vld [vmem:[#allocation7 + $0x430] sm:$0xff]
    %v737 = vld [vmem:[#allocation7 + $0x438] sm:$0xff]
    %v738 = vld [vmem:[#allocation7 + $0x440] sm:$0xff]
    %v739 = vld [vmem:[#allocation7 + $0x448] sm:$0xff]
    %v740 = vld [vmem:[#allocation7 + $0x450] sm:$0xff]
    %v741 = vld [vmem:[#allocation7 + $0x458] sm:$0xff]
    %v742 = vld [vmem:[#allocation7 + $0x460] sm:$0xff]
    %v743 = vld [vmem:[#allocation7 + $0x468] sm:$0xff]
    %v744 = vld [vmem:[#allocation7 + $0x470] sm:$0xff]
    %v745 = vld [vmem:[#allocation7 + $0x478] sm:$0xff]
    %v746 = vld [vmem:[#allocation7 + $0x480] sm:$0xff]
    %v747 = vld [vmem:[#allocation7 + $0x488] sm:$0xff]
    %v748 = vld [vmem:[#allocation7 + $0x490] sm:$0xff]
    %v749 = vld [vmem:[#allocation7 + $0x498] sm:$0xff]
    %v750 = vld [vmem:[#allocation7 + $0x4a0] sm:$0xff]
    %v751 = vld [vmem:[#allocation7 + $0x4a8] sm:$0xff]
    %v752 = vld [vmem:[#allocation7 + $0x4b0] sm:$0xff]
    %v753 = vld [vmem:[#allocation7 + $0x4b8] sm:$0xff]
    %v754 = vld [vmem:[#allocation7 + $0x4c0] sm:$0xff]
    %v755 = vld [vmem:[#allocation7 + $0x4c8] sm:$0xff]
    %v756 = vld [vmem:[#allocation7 + $0x4d0] sm:$0xff]
    %v757 = vld [vmem:[#allocation7 + $0x4d8] sm:$0xff]
    %v758 = vld [vmem:[#allocation7 + $0x4e0] sm:$0xff]
    %v759 = vld [vmem:[#allocation7 + $0x4e8] sm:$0xff]
    %v760 = vld [vmem:[#allocation7 + $0x4f0] sm:$0xff]
    %v761 = vld [vmem:[#allocation7 + $0x4f8] sm:$0xff]
    %v762 = vld [vmem:[#allocation7 + $0x500] sm:$0xff]
    %v763 = vld [vmem:[#allocation7 + $0x508] sm:$0xff]
    %v764 = vld [vmem:[#allocation7 + $0x510] sm:$0xff]
    %v765 = vld [vmem:[#allocation7 + $0x518] sm:$0xff]
    %v766 = vld [vmem:[#allocation7 + $0x520] sm:$0xff]
    %v767 = vld [vmem:[#allocation7 + $0x528] sm:$0xff]
    %v768 = vld [vmem:[#allocation7 + $0x530] sm:$0xff]
    %v769 = vld [vmem:[#allocation7 + $0x538] sm:$0xff]
    %v770 = vld [vmem:[#allocation7 + $0x540] sm:$0xff]
    %v771 = vld [vmem:[#allocation7 + $0x548] sm:$0xff]
    %v772 = vld [vmem:[#allocation7 + $0x550] sm:$0xff]
    %v773 = vld [vmem:[#allocation7 + $0x558] sm:$0xff]
    %v774 = vld [vmem:[#allocation7 + $0x560] sm:$0xff]
    %v775 = vld [vmem:[#allocation7 + $0x568] sm:$0xff]
    %v776 = vld [vmem:[#allocation7 + $0x570] sm:$0xff]
    %v777 = vld [vmem:[#allocation7 + $0x578] sm:$0xff]
    %v778 = vld [vmem:[#allocation7 + $0x580] sm:$0xff]
    %v779 = vld [vmem:[#allocation7 + $0x588] sm:$0xff]
    %v780 = vld [vmem:[#allocation7 + $0x590] sm:$0xff]
    %v781 = vld [vmem:[#allocation7 + $0x598] sm:$0xff]
    %v782 = vld [vmem:[#allocation7 + $0x5a0] sm:$0xff]
    %v783 = vld [vmem:[#allocation7 + $0x5a8] sm:$0xff]
    %v784 = vld [vmem:[#allocation7 + $0x5b0] sm:$0xff]
    %v785 = vld [vmem:[#allocation7 + $0x5b8] sm:$0xff]
    %v786 = vld [vmem:[#allocation7 + $0x5c0] sm:$0xff]
    %v787 = vld [vmem:[#allocation7 + $0x5c8] sm:$0xff]
    %v788 = vld [vmem:[#allocation7 + $0x5d0] sm:$0xff]
    %v789 = vld [vmem:[#allocation7 + $0x5d8] sm:$0xff]
    %v790 = vld [vmem:[#allocation7 + $0x5e0] sm:$0xff]
    %v791 = vld [vmem:[#allocation7 + $0x5e8] sm:$0xff]
    %v792 = vld [vmem:[#allocation7 + $0x5f0] sm:$0xff]
    %v793 = vld [vmem:[#allocation7 + $0x5f8] sm:$0xff]
    %v794 = vld [vmem:[#allocation7 + $0x600] sm:$0xff]
    %v795 = vld [vmem:[#allocation7 + $0x608] sm:$0xff]
    %v796 = vld [vmem:[#allocation7 + $0x610] sm:$0xff]
    %v797 = vld [vmem:[#allocation7 + $0x618] sm:$0xff]
    %v798 = vld [vmem:[#allocation7 + $0x620] sm:$0xff]
    %v799 = vld [vmem:[#allocation7 + $0x628] sm:$0xff]
    %v800 = vld [vmem:[#allocation7 + $0x630] sm:$0xff]
    %v801 = vld [vmem:[#allocation7 + $0x638] sm:$0xff]
    %v802 = vld [vmem:[#allocation7 + $0x640] sm:$0xff]
    %v803 = vld [vmem:[#allocation7 + $0x648] sm:$0xff]
    %v804 = vld [vmem:[#allocation7 + $0x650] sm:$0xff]
    %v805 = vld [vmem:[#allocation7 + $0x658] sm:$0xff]
    %v806 = vld [vmem:[#allocation7 + $0x660] sm:$0xff]
    %v807 = vld [vmem:[#allocation7 + $0x668] sm:$0xff]
    %v808 = vld [vmem:[#allocation7 + $0x670] sm:$0xff]
    %v809 = vld [vmem:[#allocation7 + $0x678] sm:$0xff]
    %v810 = vld [vmem:[#allocation7 + $0x680] sm:$0xff]
    %v811 = vld [vmem:[#allocation7 + $0x688] sm:$0xff]
    %v812 = vld [vmem:[#allocation7 + $0x690] sm:$0xff]
    %v813 = vld [vmem:[#allocation7 + $0x698] sm:$0xff]
    %v814 = vld [vmem:[#allocation7 + $0x6a0] sm:$0xff]
    %v815 = vld [vmem:[#allocation7 + $0x6a8] sm:$0xff]
    %v816 = vld [vmem:[#allocation7 + $0x6b0] sm:$0xff]
    %v817 = vld [vmem:[#allocation7 + $0x6b8] sm:$0xff]
    %v818 = vld [vmem:[#allocation7 + $0x6c0] sm:$0xff]
    %v819 = vld [vmem:[#allocation7 + $0x6c8] sm:$0xff]
    %v820 = vld [vmem:[#allocation7 + $0x6d0] sm:$0xff]
    %v821 = vld [vmem:[#allocation7 + $0x6d8] sm:$0xff]
    %v822 = vld [vmem:[#allocation7 + $0x6e0] sm:$0xff]
    %v823 = vld [vmem:[#allocation7 + $0x6e8] sm:$0xff]
    %v824 = vld [vmem:[#allocation7 + $0x6f0] sm:$0xff]
    %v825 = vld [vmem:[#allocation7 + $0x6f8] sm:$0xff]
    %v826 = vld [vmem:[#allocation7 + $0x700] sm:$0xff]
    %v827 = vld [vmem:[#allocation7 + $0x708] sm:$0xff]
    %v828 = vld [vmem:[#allocation7 + $0x710] sm:$0xff]
    %v829 = vld [vmem:[#allocation7 + $0x718] sm:$0xff]
    %v830 = vld [vmem:[#allocation7 + $0x720] sm:$0xff]
    %v831 = vld [vmem:[#allocation7 + $0x728] sm:$0xff]
    %v832 = vld [vmem:[#allocation7 + $0x730] sm:$0xff]
    %v833 = vld [vmem:[#allocation7 + $0x738] sm:$0xff]
    %v834 = vld [vmem:[#allocation7 + $0x740] sm:$0xff]
    %v835 = vld [vmem:[#allocation7 + $0x748] sm:$0xff]
    %v836 = vld [vmem:[#allocation7 + $0x750] sm:$0xff]
    %v837 = vld [vmem:[#allocation7 + $0x758] sm:$0xff]
    %v838 = vld [vmem:[#allocation7 + $0x760] sm:$0xff]
    %v839 = vld [vmem:[#allocation7 + $0x768] sm:$0xff]
    %v840 = vld [vmem:[#allocation7 + $0x770] sm:$0xff]
    %v841 = vld [vmem:[#allocation7 + $0x778] sm:$0xff]
    %v842 = vld [vmem:[#allocation7 + $0x780] sm:$0xff]
    %v843 = vld [vmem:[#allocation7 + $0x788] sm:$0xff]
    %v844 = vld [vmem:[#allocation7 + $0x790] sm:$0xff]
    %v845 = vld [vmem:[#allocation7 + $0x798] sm:$0xff]
    %v846 = vld [vmem:[#allocation7 + $0x7a0] sm:$0xff]
    %v847 = vld [vmem:[#allocation7 + $0x7a8] sm:$0xff]
    %v848 = vld [vmem:[#allocation7 + $0x7b0] sm:$0xff]
    %v849 = vld [vmem:[#allocation7 + $0x7b8] sm:$0xff]
    %v850 = vld [vmem:[#allocation7 + $0x7c0] sm:$0xff]
    %v851 = vld [vmem:[#allocation7 + $0x7c8] sm:$0xff]
    %v852 = vld [vmem:[#allocation7 + $0x7d0] sm:$0xff]
    %v853 = vld [vmem:[#allocation7 + $0x7d8] sm:$0xff]
    %v854 = vld [vmem:[#allocation7 + $0x7e0] sm:$0xff]
    %v855 = vld [vmem:[#allocation7 + $0x7e8] sm:$0xff]
    %v856 = vld [vmem:[#allocation7 + $0x7f0] sm:$0xff]
    %v857 = vld [vmem:[#allocation7 + $0x7f8] sm:$0xff]
    %858 = vmatprep.subr.mxu0 %v663
    %859 = vmatpush1.msra.mxu0 %v662
    %860 = vmatprep.subr.mxu0 %v659
    %861 = vmatpush1.msra.mxu0 %v658
    %862 = vmatprep.subr.mxu0 %v655
    %863 = vmatpush1.msra.mxu0 %v654
    %864 = vmatprep.subr.mxu0 %v651
    %865 = vmatpush1.msra.mxu0 %v650
    %866 = vmatprep.subr.mxu0 %v647
    %867 = vmatpush1.msra.mxu0 %v646
    %868 = vmatprep.subr.mxu0 %v643
    %869 = vmatpush1.msra.mxu0 %v642
    %870 = vmatprep.subr.mxu0 %v639
    %871 = vmatpush1.msra.mxu0 %v638
    %872 = vmatprep.subr.mxu0 %v635
    %873 = vmatpush1.msra.mxu0 %v634
    %874 = vmatprep.subr.mxu0 %v631
    %875 = vmatpush1.msra.mxu0 %v630
    %876 = vmatprep.subr.mxu0 %v627
    %877 = vmatpush1.msra.mxu0 %v626
    %878 = vmatprep.subr.mxu0 %v623
    %879 = vmatpush1.msra.mxu0 %v622
    %880 = vmatprep.subr.mxu0 %v619
    %881 = vmatpush1.msra.mxu0 %v618
    %882 = vmatprep.subr.mxu0 %v615
    %883 = vmatpush1.msra.mxu0 %v614
    %884 = vmatprep.subr.mxu0 %v611
    %885 = vmatpush1.msra.mxu0 %v610
    %886 = vmatprep.subr.mxu0 %v607
    %887 = vmatpush1.msra.mxu0 %v606
    %888 = vmatprep.subr.mxu0 %v603
    %889 = vmatpush1.msra.mxu0 %v602
    %890 = vmatprep.subr.mxu0 %v727
    %891 = vmatpush2.msra.mxu0 %v726
    %892 = vmatprep.subr.mxu0 %v723
    %893 = vmatpush2.msra.mxu0 %v722
    %894 = vmatprep.subr.mxu0 %v719
    %895 = vmatpush2.msra.mxu0 %v718
    %896 = vmatprep.subr.mxu0 %v715
    %897 = vmatpush2.msra.mxu0 %v714
    %898 = vmatprep.subr.mxu0 %v711
    %899 = vmatpush2.msra.mxu0 %v710
    %900 = vmatprep.subr.mxu0 %v707
    %901 = vmatpush2.msra.mxu0 %v706
    %902 = vmatprep.subr.mxu0 %v703
    %903 = vmatpush2.msra.mxu0 %v702
    %904 = vmatprep.subr.mxu0 %v699
    %905 = vmatpush2.msra.mxu0 %v698
    %906 = vmatprep.subr.mxu0 %v695
    %907 = vmatpush2.msra.mxu0 %v694
    %908 = vmatprep.subr.mxu0 %v691
    %909 = vmatpush2.msra.mxu0 %v690
    %910 = vmatprep.subr.mxu0 %v687
    %911 = vmatpush2.msra.mxu0 %v686
    %912 = vmatprep.subr.mxu0 %v683
    %913 = vmatpush2.msra.mxu0 %v682
    %914 = vmatprep.subr.mxu0 %v679
    %915 = vmatpush2.msra.mxu0 %v678
    %916 = vmatprep.subr.mxu0 %v675
    %917 = vmatpush2.msra.mxu0 %v674
    %918 = vmatprep.subr.mxu0 %v671
    %919 = vmatpush2.msra.mxu0 %v670
    %920 = vmatprep.subr.mxu0 %v667
    %921 = vmatpush2.msra.mxu0 %v666
    %922 = vmatprep.mubr.f32.mxu0 %v599
    %923 = vmatmul.mubr.f32.gmra.mxu0 %v598
    %v924 = vpop.f32.mrf.mxu0
    %v925 = vadd.f32 0.0, %v924
    %v926 = vpop.f32.mrf.mxu0
    %v927 = vadd.f32 0.0, %v926
    %928 = vdwg.mxu0
    %929 = vmatprep.subr.mxu0 %v791
    %930 = vmatpush1.msra.mxu0 %v790
    %931 = vmatprep.subr.mxu0 %v787
    %932 = vmatpush1.msra.mxu0 %v786
    %933 = vmatprep.subr.mxu0 %v783
    %934 = vmatpush1.msra.mxu0 %v782
    %935 = vmatprep.subr.mxu0 %v779
    %936 = vmatpush1.msra.mxu0 %v778
    %937 = vmatprep.subr.mxu0 %v775
    %938 = vmatpush1.msra.mxu0 %v774
    %939 = vmatprep.subr.mxu0 %v771
    %940 = vmatpush1.msra.mxu0 %v770
    %941 = vmatprep.subr.mxu0 %v767
    %942 = vmatpush1.msra.mxu0 %v766
    %943 = vmatprep.subr.mxu0 %v763
    %944 = vmatpush1.msra.mxu0 %v762
    %945 = vmatprep.subr.mxu0 %v759
    %946 = vmatpush1.msra.mxu0 %v758
    %947 = vmatprep.subr.mxu0 %v755
    %948 = vmatpush1.msra.mxu0 %v754
    %949 = vmatprep.subr.mxu0 %v751
    %950 = vmatpush1.msra.mxu0 %v750
    %951 = vmatprep.subr.mxu0 %v747
    %952 = vmatpush1.msra.mxu0 %v746
    %953 = vmatprep.subr.mxu0 %v743
    %954 = vmatpush1.msra.mxu0 %v742
    %955 = vmatprep.subr.mxu0 %v739
    %956 = vmatpush1.msra.mxu0 %v738
    %957 = vmatprep.subr.mxu0 %v735
    %958 = vmatpush1.msra.mxu0 %v734
    %959 = vmatprep.subr.mxu0 %v731
    %960 = vmatpush1.msra.mxu0 %v730
    %961 = vmatprep.subr.mxu0 %v855
    %962 = vmatpush2.msra.mxu0 %v854
    %963 = vmatprep.subr.mxu0 %v851
    %964 = vmatpush2.msra.mxu0 %v850
    %965 = vmatprep.subr.mxu0 %v847
    %966 = vmatpush2.msra.mxu0 %v846
    %967 = vmatprep.subr.mxu0 %v843
    %968 = vmatpush2.msra.mxu0 %v842
    %969 = vmatprep.subr.mxu0 %v839
    %970 = vmatpush2.msra.mxu0 %v838
    %971 = vmatprep.subr.mxu0 %v835
    %972 = vmatpush2.msra.mxu0 %v834
    %973 = vmatprep.subr.mxu0 %v831
    %974 = vmatpush2.msra.mxu0 %v830
    %975 = vmatprep.subr.mxu0 %v827
    %976 = vmatpush2.msra.mxu0 %v826
    %977 = vmatprep.subr.mxu0 %v823
    %978 = vmatpush2.msra.mxu0 %v822
    %979 = vmatprep.subr.mxu0 %v819
    %980 = vmatpush2.msra.mxu0 %v818
    %981 = vmatprep.subr.mxu0 %v815
    %982 = vmatpush2.msra.mxu0 %v814
    %983 = vmatprep.subr.mxu0 %v811
    %984 = vmatpush2.msra.mxu0 %v810
    %985 = vmatprep.subr.mxu0 %v807
    %986 = vmatpush2.msra.mxu0 %v806
    %987 = vmatprep.subr.mxu0 %v803
    %988 = vmatpush2.msra.mxu0 %v802
    %989 = vmatprep.subr.mxu0 %v799
    %990 = vmatpush2.msra.mxu0 %v798
    %991 = vmatprep.subr.mxu0 %v795
    %992 = vmatpush2.msra.mxu0 %v794
    %993 = vmatprep.mubr.f32.mxu0 %v601
    %994 = vmatmul.mubr.f32.gmra.mxu0 %v600
    %v995 = vpop.f32.mrf.mxu0
    %v996 = vadd.f32 %v925, %v995
    %v997 = vpop.f32.mrf.mxu0
    %v998 = vadd.f32 %v927, %v997
    %999 = vdwg.mxu0
    %1000 = vmatprep.subr.mxu0 %v665
    %1001 = vmatpush1.msra.mxu0 %v664
    %1002 = vmatprep.subr.mxu0 %v661
    %1003 = vmatpush1.msra.mxu0 %v660
    %1004 = vmatprep.subr.mxu0 %v657
    %1005 = vmatpush1.msra.mxu0 %v656
    %1006 = vmatprep.subr.mxu0 %v653
    %1007 = vmatpush1.msra.mxu0 %v652
    %1008 = vmatprep.subr.mxu0 %v649
    %1009 = vmatpush1.msra.mxu0 %v648
    %1010 = vmatprep.subr.mxu0 %v645
    %1011 = vmatpush1.msra.mxu0 %v644
    %1012 = vmatprep.subr.mxu0 %v641
    %1013 = vmatpush1.msra.mxu0 %v640
    %1014 = vmatprep.subr.mxu0 %v637
    %1015 = vmatpush1.msra.mxu0 %v636
    %1016 = vmatprep.subr.mxu0 %v633
    %1017 = vmatpush1.msra.mxu0 %v632
    %1018 = vmatprep.subr.mxu0 %v629
    %1019 = vmatpush1.msra.mxu0 %v628
    %1020 = vmatprep.subr.mxu0 %v625
    %1021 = vmatpush1.msra.mxu0 %v624
    %1022 = vmatprep.subr.mxu0 %v621
    %1023 = vmatpush1.msra.mxu0 %v620
    %1024 = vmatprep.subr.mxu0 %v617
    %1025 = vmatpush1.msra.mxu0 %v616
    %1026 = vmatprep.subr.mxu0 %v613
    %1027 = vmatpush1.msra.mxu0 %v612
    %1028 = vmatprep.subr.mxu0 %v609
    %1029 = vmatpush1.msra.mxu0 %v608
    %1030 = vmatprep.subr.mxu0 %v605
    %1031 = vmatpush1.msra.mxu0 %v604
    %1032 = vmatprep.subr.mxu0 %v729
    %1033 = vmatpush2.msra.mxu0 %v728
    %1034 = vmatprep.subr.mxu0 %v725
    %1035 = vmatpush2.msra.mxu0 %v724
    %1036 = vmatprep.subr.mxu0 %v721
    %1037 = vmatpush2.msra.mxu0 %v720
    %1038 = vmatprep.subr.mxu0 %v717
    %1039 = vmatpush2.msra.mxu0 %v716
    %1040 = vmatprep.subr.mxu0 %v713
    %1041 = vmatpush2.msra.mxu0 %v712
    %1042 = vmatprep.subr.mxu0 %v709
    %1043 = vmatpush2.msra.mxu0 %v708
    %1044 = vmatprep.subr.mxu0 %v705
    %1045 = vmatpush2.msra.mxu0 %v704
    %1046 = vmatprep.subr.mxu0 %v701
    %1047 = vmatpush2.msra.mxu0 %v700
    %1048 = vmatprep.subr.mxu0 %v697
    %1049 = vmatpush2.msra.mxu0 %v696
    %1050 = vmatprep.subr.mxu0 %v693
    %1051 = vmatpush2.msra.mxu0 %v692
    %1052 = vmatprep.subr.mxu0 %v689
    %1053 = vmatpush2.msra.mxu0 %v688
    %1054 = vmatprep.subr.mxu0 %v685
    %1055 = vmatpush2.msra.mxu0 %v684
    %1056 = vmatprep.subr.mxu0 %v681
    %1057 = vmatpush2.msra.mxu0 %v680
    %1058 = vmatprep.subr.mxu0 %v677
    %1059 = vmatpush2.msra.mxu0 %v676
    %1060 = vmatprep.subr.mxu0 %v673
    %1061 = vmatpush2.msra.mxu0 %v672
    %1062 = vmatprep.subr.mxu0 %v669
    %1063 = vmatpush2.msra.mxu0 %v668
    %1064 = vmatprep.mubr.f32.mxu0 %v599
    %1065 = vmatmul.mubr.f32.gmra.mxu0 %v598
    %v1066 = vpop.f32.mrf.mxu0
    %v1067 = vadd.f32 0.0, %v1066
    %v1068 = vpop.f32.mrf.mxu0
    %v1069 = vadd.f32 0.0, %v1068
    %1070 = vdwg.mxu0
    %1071 = vmatprep.subr.mxu0 %v793
    %1072 = vmatpush1.msra.mxu0 %v792
    %1073 = vmatprep.subr.mxu0 %v789
    %1074 = vmatpush1.msra.mxu0 %v788
    %1075 = vmatprep.subr.mxu0 %v785
    %1076 = vmatpush1.msra.mxu0 %v784
    %1077 = vmatprep.subr.mxu0 %v781
    %1078 = vmatpush1.msra.mxu0 %v780
    %1079 = vmatprep.subr.mxu0 %v777
    %1080 = vmatpush1.msra.mxu0 %v776
    %1081 = vmatprep.subr.mxu0 %v773
    %1082 = vmatpush1.msra.mxu0 %v772
    %1083 = vmatprep.subr.mxu0 %v769
    %1084 = vmatpush1.msra.mxu0 %v768
    %1085 = vmatprep.subr.mxu0 %v765
    %1086 = vmatpush1.msra.mxu0 %v764
    %1087 = vmatprep.subr.mxu0 %v761
    %1088 = vmatpush1.msra.mxu0 %v760
    %1089 = vmatprep.subr.mxu0 %v757
    %1090 = vmatpush1.msra.mxu0 %v756
    %1091 = vmatprep.subr.mxu0 %v753
    %1092 = vmatpush1.msra.mxu0 %v752
    %1093 = vmatprep.subr.mxu0 %v749
    %1094 = vmatpush1.msra.mxu0 %v748
    %1095 = vmatprep.subr.mxu0 %v745
    %1096 = vmatpush1.msra.mxu0 %v744
    %1097 = vmatprep.subr.mxu0 %v741
    %1098 = vmatpush1.msra.mxu0 %v740
    %1099 = vmatprep.subr.mxu0 %v737
    %1100 = vmatpush1.msra.mxu0 %v736
    %1101 = vmatprep.subr.mxu0 %v733
    %1102 = vmatpush1.msra.mxu0 %v732
    %1103 = vmatprep.subr.mxu0 %v857
    %1104 = vmatpush2.msra.mxu0 %v856
    %1105 = vmatprep.subr.mxu0 %v853
    %1106 = vmatpush2.msra.mxu0 %v852
    %1107 = vmatprep.subr.mxu0 %v849
    %1108 = vmatpush2.msra.mxu0 %v848
    %1109 = vmatprep.subr.mxu0 %v845
    %1110 = vmatpush2.msra.mxu0 %v844
    %1111 = vmatprep.subr.mxu0 %v841
    %1112 = vmatpush2.msra.mxu0 %v840
    %1113 = vmatprep.subr.mxu0 %v837
    %1114 = vmatpush2.msra.mxu0 %v836
    %1115 = vmatprep.subr.mxu0 %v833
    %1116 = vmatpush2.msra.mxu0 %v832
    %1117 = vmatprep.subr.mxu0 %v829
    %1118 = vmatpush2.msra.mxu0 %v828
    %1119 = vmatprep.subr.mxu0 %v825
    %1120 = vmatpush2.msra.mxu0 %v824
    %1121 = vmatprep.subr.mxu0 %v821
    %1122 = vmatpush2.msra.mxu0 %v820
    %1123 = vmatprep.subr.mxu0 %v817
    %1124 = vmatpush2.msra.mxu0 %v816
    %1125 = vmatprep.subr.mxu0 %v813
    %1126 = vmatpush2.msra.mxu0 %v812
    %1127 = vmatprep.subr.mxu0 %v809
    %1128 = vmatpush2.msra.mxu0 %v808
    %1129 = vmatprep.subr.mxu0 %v805
    %1130 = vmatpush2.msra.mxu0 %v804
    %1131 = vmatprep.subr.mxu0 %v801
    %1132 = vmatpush2.msra.mxu0 %v800
    %1133 = vmatprep.subr.mxu0 %v797
    %1134 = vmatpush2.msra.mxu0 %v796
    %1135 = vmatprep.mubr.f32.mxu0 %v601
    %1136 = vmatmul.mubr.f32.gmra.mxu0 %v600
    %v1137 = vpop.f32.mrf.mxu0
    %v1138 = vadd.f32 %v1067, %v1137
    %v1139 = vpop.f32.mrf.mxu0
    %v1140 = vadd.f32 %v1069, %v1139
    %1141 = vdwg.mxu0
    %v1142 = vxor.u32 %v996, 2147483648
    %v1143 = vxor.u32 %v998, 2147483648
    %v1144 = vxor.u32 %v1138, 2147483648
    %v1145 = vxor.u32 %v1140, 2147483648
    %v1146 = vmul.f32 %v1142, 1.442695
    %v1147 = vpow.pop %v1146
    %v1148 = vmul.f32 %v1143, 1.442695
    %v1149 = vpow.pop %v1148
    %v1150 = vmul.f32 %v1144, 1.442695
    %v1151 = vpow.pop %v1150
    %v1152 = vmul.f32 %v1145, 1.442695
    %v1153 = vpow.pop %v1152
    %v1154 = vadd.f32 %v1147, 1.0
    %v1155 = vadd.f32 %v1149, 1.0
    %v1156 = vadd.f32 %v1151, 1.0
    %v1157 = vadd.f32 %v1153, 1.0
    %v1158 = vrcp.pop %v1154
    %v1159 = vmul.f32 1.0, %v1158
    %v1160 = vrcp.pop %v1155
    %v1161 = vmul.f32 1.0, %v1160
    %v1162 = vrcp.pop %v1156
    %v1163 = vmul.f32 1.0, %v1162
    %v1164 = vrcp.pop %v1157
    %v1165 = vmul.f32 1.0, %v1164
    %v1166 = vmul.f32 %v1159, 0.001953125
    %v1167 = vmul.f32 %v1161, 0.001953125
    %v1168 = vmul.f32 %v1163, 0.001953125
    %v1169 = vmul.f32 %v1165, 0.001953125
    %1170 = vst [vmem:[#allocation8] sm:$0xff] %v1166
    %1171 = vst [vmem:[#allocation8 + $0x8] sm:$0xff] %v1167
    %1172 = vst [vmem:[#allocation8 + $0x10] sm:$0xff] %v1168
    %1173 = vst [vmem:[#allocation8 + $0x18] sm:$0xff] %v1169
    // Predicated region
    $region26: #{tpu_custom_call.1} parent=1 // pred_check
      _
    $region27: #{tpu_custom_call.1} parent=1 // pred_check_branch
      %1175 = sbr.rel (0) target = $region29
    $region28: #{tpu_custom_call.1} parent=1 // pred_region
      %s1177 = ssub.s32 512, 512
      %1178 = vsyncadd [#allocation4], %s1177
      %s1180 = sshll.u32 [#allocation8], 4
      %s1181 = int_to_ptr.vmem [resolvable:$true] %s1180
      %1183 = dma.vmem_to_hbm [thread:$0]  %s1181, 512, %s3, [#allocation4]
    $region29: #{tpu_custom_call.1} parent=1 // pred_fallthru
      _
    // Predicated region
    $region30: #{tpu_custom_call.1} parent=1 // pred_check
      _
    $region31: #{tpu_custom_call.1} parent=1 // pred_check_branch
      %1185 = sbr.rel (0) target = $region33
    $region32: #{tpu_custom_call.1} parent=1 // pred_region
      %1186 = dma.done [#allocation4], 512
    $region33: #{tpu_custom_call.1} parent=1 // pred_fallthru
      _
    %1187 = vsyncpa [#allocation3], 1
    %1188 = vsyncpa [#allocation6], 1
    %1189 = vsyncpa [#allocation4], 1

</llo_original>
